<compile_context>
chip_gen: v7x
topology: tpu7x:2x2x1
jax: 0.10.0
libtpu: 0.0.40
codegen_flags: <defaults>
</compile_context>

<pallas_src>
import functools

import jax
import jax.numpy as jnp
from jax.experimental import pallas as pl
from jax.experimental.pallas import tpu as pltpu


def _round_up(v, m):
    return ((v + m - 1) // m) * m


def _device_vmem_budget():
    """(vmem_limit_bytes, min #row tiles) tuned per TPU generation."""
    kind = ""
    try:
        kind = jax.devices()[0].device_kind.lower()
    except Exception:
        pass
    if "v7" in kind or "7x" in kind:
        # v7x: 64 MiB VMEM per TensorCore but 2 TCs -> keep >=4 row tiles so
        # the "parallel" grid axis actually splits across both cores.
        return 48 * 1024 * 1024, 4
    if "v2" in kind or "v3" in kind:
        return 12 * 1024 * 1024, 2
    # v4 / v5e / v5p / v6e: 128 MiB physical VMEM.
    return 96 * 1024 * 1024, 2


def _pick_tiles(n_pad, a_elem_bytes, f_mid, f_out, hs_resident, budget,
                min_row_tiles):
    """Largest (tm, tk) whose worst-case (fused) VMEM footprint fits."""
    cands_m = [t for t in (1024, 512, 256, 128) if n_pad % t == 0]
    cands_k = [t for t in (2048, 1024, 512, 256, 128) if n_pad % t == 0]
    pref_m = [t for t in cands_m if n_pad // t >= min_row_tiles] or cands_m
    usable = int(budget * 0.75)

    def est(tm, tk):
        v = 2 * tm * tk * a_elem_bytes                              # A (dbuf)
        v += (2 * n_pad if hs_resident else 2 * tk) * f_mid * 2     # hs bf16
        v += tm * f_mid * 4                                         # f32 acc
        v += 2 * tm * f_out * 4                                     # out tiles
        v += 2 * f_mid * f_out * 2                                  # W2 bf16
        v += 2 * tm * 128 * 4 + 4 * 8 * f_mid * 4                   # dinv/bias
        return v

    for tm in pref_m:
        for tk in cands_k:
            if est(tm, tk) <= usable:
                return tm, tk
    return cands_m[-1], cands_k[-1]


# ---------------------------------------------------------------------------
# Kernel 1: layer-1 feature transform    hs1 = dinv ⊙ (X @ W1)   (bf16 out)
# ---------------------------------------------------------------------------
def _transform_kernel(x_ref, w_ref, dinv_ref, o_ref):
    h = jnp.dot(x_ref[...], w_ref[...], preferred_element_type=jnp.float32)
    o_ref[...] = (h * dinv_ref[...]).astype(o_ref.dtype)


def _transform(x_bf16, w_bf16, dinv_col, *, tm, vmem_limit):
    n_pad, f_in = x_bf16.shape
    f_out = w_bf16.shape[1]
    return pl.pallas_call(
        _transform_kernel,
        out_shape=jax.ShapeDtypeStruct((n_pad, f_out), jnp.bfloat16),
        grid_spec=pltpu.PrefetchScalarGridSpec(
            num_scalar_prefetch=0,
            grid=(n_pad // tm,),
            in_specs=[
                pl.BlockSpec((tm, f_in), lambda i: (i, 0)),
                pl.BlockSpec((f_in, f_out), lambda i: (0, 0)),
                pl.BlockSpec((tm, 1), lambda i: (i, 0)),
            ],
            out_specs=pl.BlockSpec((tm, f_out), lambda i: (i, 0)),
        ),
        compiler_params=pltpu.CompilerParams(
            dimension_semantics=("parallel",),
            vmem_limit_bytes=vmem_limit,
        ),
        cost_estimate=pl.CostEstimate(
            flops=2 * n_pad * f_in * f_out,
            transcendentals=0,
            bytes_accessed=2 * n_pad * f_in + 2 * f_in * f_out + 2 * n_pad * f_out,
        ),
    )(x_bf16, w_bf16, dinv_col)


# ---------------------------------------------------------------------------
# Kernel 2: tiled aggregation   acc = A @ hs  over a (rows, k) grid.
# Finalize:  out = acc*dinv + b  [+ ReLU, + dropout]  [+ fused (out@W2)*dinv].
# ---------------------------------------------------------------------------
def _aggregate_kernel(seed_ref, a_ref, hs_ref, dinv_ref, b_ref, *rest,
                      hs_resident, tk, fuse_w2, apply_relu, dropout_p,
                      training, layer):
    if fuse_w2:
        w2_ref, o_ref, acc_ref = rest
    else:
        (o_ref,) = rest
        acc_ref = o_ref           # f32 output tile doubles as the accumulator

    k = pl.program_id(1)

    @pl.when(k == 0)
    def _():
        acc_ref[...] = jnp.zeros_like(acc_ref)

    a_tile = a_ref[...]
    if a_tile.dtype != jnp.bfloat16:
        a_tile = a_tile.astype(jnp.bfloat16)      # int8 HBM storage -> bf16 MXU
    if hs_resident:
        start = pl.multiple_of(k * tk, tk)
        hs_tile = hs_ref[pl.ds(start, tk), :]     # hs lives fully in VMEM
    else:
        hs_tile = hs_ref[...]
    acc_ref[...] += jnp.dot(a_tile, hs_tile, preferred_element_type=jnp.float32)

    @pl.when(k == pl.num_programs(1) - 1)
    def _():
        out = acc_ref[...] * dinv_ref[...] + b_ref[...]
        if apply_relu:
            out = jnp.maximum(out, 0.0)
        if training and dropout_p > 0.0:
            # One PRNG stream per (layer, row tile); threshold-compare raw
            # bits (no shift / int->f32 convert hazard).
            pltpu.prng_seed(seed_ref[0] + layer * 65537 + pl.program_id(0))
            bits = pltpu.bitcast(pltpu.prng_random_bits(out.shape), jnp.int32)
            # bits uniform over [-2^31, 2^31); keep iff bits >= (p-0.5)*2^32.
            thr = jnp.int32(int(round((dropout_p - 0.5) * (2.0 ** 32))))
            out = jnp.where(bits >= thr, out * (1.0 / (1.0 - dropout_p)), 0.0)
        if fuse_w2:
            # Fused layer-2 feature transform:  hs2 = dinv ⊙ (h1 @ W2).
            out = jnp.dot(out.astype(jnp.bfloat16), w2_ref[...],
                          preferred_element_type=jnp.float32) * dinv_ref[...]
        o_ref[...] = out.astype(o_ref.dtype)


def _aggregate(a_store, hs, dinv_col, b_row, seed_arr, *, tm, tk, hs_resident,
               vmem_limit, apply_relu, dropout_p, training, layer, w2=None):
    n_pad = a_store.shape[0]
    f_mid = hs.shape[1]
    fuse_w2 = w2 is not None
    f_out = w2.shape[1] if fuse_w2 else f_mid

    kernel = functools.partial(
        _aggregate_kernel, hs_resident=hs_resident, tk=tk, fuse_w2=fuse_w2,
        apply_relu=apply_relu, dropout_p=dropout_p, training=training,
        layer=layer)

    if hs_resident:
        hs_spec = pl.BlockSpec((n_pad, f_mid), lambda i, k, s: (0, 0))
    else:
        hs_spec = pl.BlockSpec((tk, f_mid), lambda i, k, s: (k, 0))

    in_specs = [
        pl.BlockSpec((tm, tk), lambda i, k, s: (i, k)),       # A tile
        hs_spec,                                              # hs
        pl.BlockSpec((tm, 1), lambda i, k, s: (i, 0)),        # dinv rows
        pl.BlockSpec((1, f_mid), lambda i, k, s: (0, 0)),     # bias
    ]
    inputs = [a_store, hs, dinv_col, b_row]
    if fuse_w2:
        in_specs.append(pl.BlockSpec((f_mid, f_out), lambda i, k, s: (0, 0)))
        inputs.append(w2)
        scratch = [pltpu.VMEM((tm, f_mid), jnp.float32)]
        out_dtype = jnp.bfloat16
    else:
        scratch = []
        out_dtype = jnp.float32

    a_bytes = a_store.dtype.itemsize
    hs_bytes = (n_pad if hs_resident else (n_pad // tm) * n_pad) * f_mid * 2

    return pl.pallas_call(
        kernel,
        out_shape=jax.ShapeDtypeStruct((n_pad, f_out), out_dtype),
        grid_spec=pltpu.PrefetchScalarGridSpec(
            num_scalar_prefetch=1,                            # seed -> SMEM
            grid=(n_pad // tm, n_pad // tk),
            in_specs=in_specs,
            out_specs=pl.BlockSpec((tm, f_out), lambda i, k, s: (i, 0)),
            scratch_shapes=scratch,
        ),
        compiler_params=pltpu.CompilerParams(
            dimension_semantics=("parallel", "arbitrary"),
            vmem_limit_bytes=vmem_limit,
        ),
        cost_estimate=pl.CostEstimate(
            flops=2 * n_pad * n_pad * f_mid
                  + (2 * n_pad * f_mid * f_out if fuse_w2 else 0),
            transcendentals=0,
            bytes_accessed=a_bytes * n_pad * n_pad + hs_bytes
                           + n_pad * f_out * (2 if fuse_w2 else 4),
        ),
    )(seed_arr, *inputs)


# ---------------------------------------------------------------------------
# Wrapper: glue (single-pass dense A scatter, segment-sum degrees, padding)
# + the two GCNcConv layers (transform, fused aggregate, final aggregate).
# ---------------------------------------------------------------------------
def two_layer_gcn_c(x, edge_index, w1, b1, w2, b2, *, c=1.0,
                    training=False, seed=0):
    """x: (N, F) f32, edge_index: (2, E) int32, w1: (F, H), w2: (H, C)."""
    n, f = x.shape
    h_dim = w1.shape[1]
    n_cls = w2.shape[1]
    e = edge_index.shape[1]

    n_pad = _round_up(max(n, 128), 128)
    f_pad = _round_up(f, 128)
    h_pad = _round_up(h_dim, 128)
    c_pad = _round_up(n_cls, 128)

    budget, min_row_tiles = _device_vmem_budget()

    # Glue: flow='target_to_source' => aggregate at edge_index[0] from
    # edge_index[1]; self-loops appended to the edge list (no eye() add).
    src, dst = edge_index[0], edge_index[1]
    loops = jnp.arange(n, dtype=src.dtype)
    src_all = jnp.concatenate([src, loops])
    dst_all = jnp.concatenate([dst, loops])

    # Degrees via segment_sum (O(E + N)); never row-reduce the dense matrix.
    w_f32 = jnp.concatenate([jnp.ones((e,), jnp.float32),
                             jnp.full((n,), float(c), jnp.float32)])
    deg = jax.ops.segment_sum(w_f32, src_all, num_segments=n_pad)
    dinv = jnp.where(deg > 0.0, jax.lax.rsqrt(jnp.maximum(deg, 1e-30)), 0.0)
    dinv_col = dinv[:, None].astype(jnp.float32)              # (n_pad, 1)

    # Narrow A storage: int8 when c is a small integer (exact for multiplicity
    # <= 127; upcast to bf16 inside the kernel, so also valid on v7x whose MXU
    # has no int path), otherwise bf16 (exact for counts <= 256).
    # TODO(synk): edge multiplicities above those limits would need a wider
    # storage dtype; not checked here.
    if float(c) == int(c) and 0 <= int(c) <= 64:
        w_sc = jnp.concatenate([jnp.ones((e,), jnp.int8),
                                jnp.full((n,), int(c), jnp.int8)])
        a_store = jnp.zeros((n_pad, n_pad), jnp.int8).at[src_all, dst_all].add(w_sc)
    else:
        a_store = jnp.zeros((n_pad, n_pad), jnp.bfloat16).at[
            src_all, dst_all].add(w_f32.astype(jnp.bfloat16))

    # Zero-padded, lane-dense bf16 operands (padding is exact: extra rows/cols
    # contribute 0); biases stay f32 (added in the f32 epilogue).
    x_p = jnp.zeros((n_pad, f_pad), jnp.bfloat16).at[:n, :f].set(
        x.astype(jnp.bfloat16))
    w1_p = jnp.zeros((f_pad, h_pad), jnp.bfloat16).at[:f, :h_dim].set(
        w1.astype(jnp.bfloat16))
    b1_p = jnp.zeros((1, h_pad), jnp.float32).at[0, :h_dim].set(b1)
    w2_p = jnp.zeros((h_pad, c_pad), jnp.bfloat16).at[:h_dim, :n_cls].set(
        w2.astype(jnp.bfloat16))
    b2_p = jnp.zeros((1, c_pad), jnp.float32).at[0, :n_cls].set(b2)

    seed_arr = jnp.array([seed], jnp.int32)

    # hs is made fully VMEM-resident in the aggregate when it comfortably fits.
    hs_resident = 2 * n_pad * max(h_pad, c_pad) * 2 <= budget // 3
    tm, tk = _pick_tiles(n_pad, a_store.dtype.itemsize, h_pad, c_pad,
                         hs_resident, budget, min_row_tiles)

    # Layer 1 transform: hs1 = dinv ⊙ (X @ W1).
    hs1 = _transform(x_p, w1_p, dinv_col, tm=tm, vmem_limit=budget)

    # Layer 1 aggregate, fused with ReLU, dropout and the layer-2 transform:
    #   hs2 = dinv ⊙ (dropout(relu(dinv ⊙ (A @ hs1) + b1)) @ W2)
    hs2 = _aggregate(a_store, hs1, dinv_col, b1_p, seed_arr, tm=tm, tk=tk,
                     hs_resident=hs_resident, vmem_limit=budget,
                     apply_relu=True, dropout_p=0.5, training=training,
                     layer=1, w2=w2_p)

    # Layer 2 aggregate: out = dinv ⊙ (A @ hs2) + b2.
    out = _aggregate(a_store, hs2, dinv_col, b2_p, seed_arr, tm=tm, tk=tk,
                     hs_resident=hs_resident, vmem_limit=budget,
                     apply_relu=False, dropout_p=0.0, training=False,
                     layer=2)

    return out[:n, :n_cls]


# ---------------------------------------------------------------------------
# Pure-JAX f32 reference (same semantics) for a loose correctness check.
# ---------------------------------------------------------------------------
def _reference(x, edge_index, w1, b1, w2, b2, c=1.0):
    n = x.shape[0]
    src, dst = edge_index[0], edge_index[1]
    a = jnp.zeros((n, n), jnp.float32).at[src, dst].add(1.0)
    a = a + jnp.float32(c) * jnp.eye(n, dtype=jnp.float32)
    deg = jnp.sum(a, axis=1)
    dinv = jnp.where(deg > 0.0, 1.0 / jnp.sqrt(deg), 0.0)
    an = a * dinv[:, None] * dinv[None, :]
    h = jnp.maximum(an @ (x @ w1) + b1, 0.0)
    return an @ (h @ w2) + b2


if __name__ == "__main__":
    # Small deterministic problem: 64 nodes, 16 features, 32 hidden, 8 labels.
    N, F, H, C = 64, 16, 32, 8
    E = 256
    key = jax.random.PRNGKey(0)
    k_x, k_e, k_w1, k_w2 = jax.random.split(key, 4)

    x = jax.random.normal(k_x, (N, F), dtype=jnp.float32)
    edge_index = jax.random.randint(k_e, (2, E), 0, N, dtype=jnp.int32)

    # Glorot-style weights, zero biases (same shapes as GCNcConv(F,H)/(H,C)).
    w1 = jax.random.normal(k_w1, (F, H), dtype=jnp.float32) * jnp.sqrt(2.0 / (F + H))
    b1 = jnp.zeros((H,), jnp.float32)
    w2 = jax.random.normal(k_w2, (H, C), dtype=jnp.float32) * jnp.sqrt(2.0 / (H + C))
    b2 = jnp.zeros((C,), jnp.float32)

    # Eval mode (dropout identity), self-loop weight c=1 (module default).
    out = two_layer_gcn_c(x, edge_index, w1, b1, w2, b2, c=1.0, training=False)
    jax.block_until_ready(out)

    assert out.shape == (N, C) and out.dtype == jnp.float32
    ref = _reference(x, edge_index, w1, b1, w2, b2, c=1.0)
    # bf16 hs/X/W streams + f32 accumulation -> loose tolerance.
    assert jnp.allclose(out, ref, atol=5e-2, rtol=5e-2), \
        float(jnp.max(jnp.abs(out - ref)))
    print("KERNEL_OK")
</pallas_src>

<mosaic_0001>
module attributes {stable_mosaic.version = 11 : i64} {
  func.func @_transform_kernel(%arg0: i32, %arg1: memref<128x128xbf16, #tpu.memory_space<vmem>>, %arg2: memref<128x128xbf16, #tpu.memory_space<vmem>>, %arg3: memref<128x1xf32, #tpu.memory_space<vmem>>, %arg4: memref<128x128xbf16, #tpu.memory_space<vmem>>) attributes {dimension_semantics = [#tpu.dimension_semantics<parallel>], iteration_bounds = array<i64: 1>, scalar_prefetch = 0 : i64, scratch_operands = 0 : i64, tpu.core_type = #tpu.core_type<tc>, window_params = [{transform_indices = @transform_0, window_bounds = array<i64: 128, 128>}, {pipeline_mode = #tpu.pipeline_mode<synchronous>, transform_indices = @transform_1, window_bounds = array<i64: 128, 128>}, {transform_indices = @transform_2, window_bounds = array<i64: 128, 1>}, {transform_indices = @transform_3, window_bounds = array<i64: 128, 128>}]} {
    %c0 = arith.constant 0 : index
    %c0_0 = arith.constant 0 : index
    %0 = vector.load %arg1[%c0, %c0_0] : memref<128x128xbf16, #tpu.memory_space<vmem>>, vector<128x128xbf16>
    %c0_1 = arith.constant 0 : index
    %c0_2 = arith.constant 0 : index
    %1 = vector.load %arg2[%c0_1, %c0_2] : memref<128x128xbf16, #tpu.memory_space<vmem>>, vector<128x128xbf16>
    %cst = arith.constant dense<0.000000e+00> : vector<128x128xf32>
    %2 = tpu.matmul %0, %1, %cst {dimension_numbers = #tpu.dot_dimension_numbers<[1], [0], [0], [1], [0, 0, 1, 1], [], []>} : vector<128x128xbf16>, vector<128x128xbf16>, vector<128x128xf32> -> vector<128x128xf32>
    %c0_3 = arith.constant 0 : index
    %c0_4 = arith.constant 0 : index
    %3 = vector.load %arg3[%c0_3, %c0_4] : memref<128x1xf32, #tpu.memory_space<vmem>>, vector<128x1xf32>
    %4 = vector.broadcast %3 : vector<128x1xf32> to vector<128x128xf32>
    %5 = arith.mulf %2, %4 : vector<128x128xf32>
    %6 = arith.truncf %5 : vector<128x128xf32> to vector<128x128xbf16>
    %c0_5 = arith.constant 0 : index
    %c0_6 = arith.constant 0 : index
    %7 = vector.load %arg4[%c0_5, %c0_6] : memref<128x128xbf16, #tpu.memory_space<vmem>>, vector<128x128xbf16>
    tpu.vector_store %arg4[%c0_5, %c0_6], %6 {strides = array<i32>} : memref<128x128xbf16, #tpu.memory_space<vmem>>, vector<128x128xbf16>,
    return
  }
  func.func @transform_0(%arg0: i32) -> (i32, i32) {
    %c0_i32 = arith.constant 0 : i32
    %c0_i32_0 = arith.constant 0 : i32
    return %arg0, %c0_i32 : i32, i32
  }
  func.func @transform_1(%arg0: i32) -> (i32, i32) {
    %c0_i32 = arith.constant 0 : i32
    %c0_i32_0 = arith.constant 0 : i32
    %c0_i32_1 = arith.constant 0 : i32
    return %c0_i32, %c0_i32_0 : i32, i32
  }
  func.func @transform_2(%arg0: i32) -> (i32, i32) {
    %c0_i32 = arith.constant 0 : i32
    %c0_i32_0 = arith.constant 0 : i32
    return %arg0, %c0_i32 : i32, i32
  }
  func.func @transform_3(%arg0: i32) -> (i32, i32) {
    %c0_i32 = arith.constant 0 : i32
    %c0_i32_0 = arith.constant 0 : i32
    return %arg0, %c0_i32 : i32, i32
  }
}

</mosaic_0001>

<llo_original>
// kernel: tpu_custom_call.1
$region0: #{tpu_custom_call.1}
  #allocation0 [shape = 'u32[]', space=smem, size = 0x4, offset = 0x4, fixed_abs, tag = 'smem constant byte address 0x4 - core index']
  #allocation1 [shape = 'u32[144,128]{1,0:T(1,128)}', space=vmem, size = 0x12000, scoped, tag = 'internal scratch']
  %s0 = inlined_call_operand.hbm [shape: bf16[128,128], index: 0, kind: input, shape index: {}]
  %s1 = inlined_call_operand.hbm [shape: bf16[128,128], index: 1, kind: input, shape index: {}]
  %s2 = inlined_call_operand.hbm [shape: f32[128,1], index: 2, kind: input, shape index: {}]
  %s3 = inlined_call_operand.hbm [shape: bf16[128,128], index: 3, kind: output, shape index: {}]
  %s4 = sld [smem:[#allocation0]]
  $region34: #{tpu_custom_call.1} parent=0
    _
  %s6 = ssub.s32 1, %s4
  %s7 = scalar_select 0, %s6, %s4
  $region1: #{tpu_custom_call.1} parent=0
    #allocation2 [shape = 'u8[32768]{0}', space=vmem, size = 0x8000, scoped, tag = 'input window, operand 0, single buffered']
    #allocation3 [shape = 's32[1]{0}', space=sflag, size = 0x4, scoped, tag = 'scoped memory for tpu_custom_call.1']
    #allocation4 [shape = 's32[1]{0}', space=sflag, size = 0x4, scoped, tag = 'scoped memory for tpu_custom_call.1']
    #allocation5 [shape = 'u8[32768]{0}', space=vmem, size = 0x8000, scoped, tag = 'input window, operand 1, single buffered']
    #allocation6 [shape = 's32[1]{0}', space=sflag, size = 0x4, scoped, tag = 'scoped memory for tpu_custom_call.1']
    #allocation7 [shape = 'u8[65536]{0}', space=vmem, size = 0x10000, scoped, tag = 'input window, operand 2, single buffered']
    #allocation8 [shape = 'u8[32768]{0}', space=vmem, size = 0x8000, scoped, tag = 'output window, operand 0, single buffered']
    %8 = vsyncpa [#allocation3], 0
    %9 = vsyncpa [#allocation6], 0
    %10 = vsyncpa [#allocation4], 0
    // Predicated region
    $region2: #{tpu_custom_call.1} parent=1 // pred_check
      _
    $region3: #{tpu_custom_call.1} parent=1 // pred_check_branch
      %12 = sbr.rel (0) target = $region5
    $region4: #{tpu_custom_call.1} parent=1 // pred_region
      %s14 = ssub.s32 1024, 1024
      %15 = vsyncadd [#allocation3], %s14
      %s16 = sshll.u32 [#allocation2], 4
      %s17 = int_to_ptr.vmem [resolvable:$true] %s16
      %22 = dma.hbm_to_vmem [thread:$0]  %s0, 1024, %s17, [#allocation3], 64, 64, 4
    $region5: #{tpu_custom_call.1} parent=1 // pred_fallthru
      _
    // Predicated region
    $region6: #{tpu_custom_call.1} parent=1 // pred_check
      _
    $region7: #{tpu_custom_call.1} parent=1 // pred_check_branch
      %24 = sbr.rel (0) target = $region9
    $region8: #{tpu_custom_call.1} parent=1 // pred_region
      %s26 = ssub.s32 1024, 1024
      %27 = vsyncadd [#allocation6], %s26
      %s28 = sshll.u32 [#allocation5], 4
      %s29 = int_to_ptr.vmem [resolvable:$true] %s28
      %34 = dma.hbm_to_vmem [thread:$0]  %s1, 1024, %s29, [#allocation6], 64, 64, 4
    $region9: #{tpu_custom_call.1} parent=1 // pred_fallthru
      _
    // Predicated region
    $region10: #{tpu_custom_call.1} parent=1 // pred_check
      _
    $region11: #{tpu_custom_call.1} parent=1 // pred_check_branch
      %36 = sbr.rel (0) target = $region13
    $region12: #{tpu_custom_call.1} parent=1 // pred_region
      %s38 = ssub.s32 2048, 2048
      %39 = vsyncadd [#allocation6], %s38
      %s40 = sshll.u32 [#allocation7], 4
      %s41 = int_to_ptr.vmem [resolvable:$true] %s40
      %46 = dma.hbm_to_vmem [thread:$0]  %s2, 2048, %s41, [#allocation6], 128, 128, 8
    $region13: #{tpu_custom_call.1} parent=1 // pred_fallthru
      _
    // Predicated region
    $region14: #{tpu_custom_call.1} parent=1 // pred_check
      _
    $region15: #{tpu_custom_call.1} parent=1 // pred_check_branch
      %48 = sbr.rel (0) target = $region17
    $region16: #{tpu_custom_call.1} parent=1 // pred_region
      %49 = dma.done [#allocation3], 1024
    $region17: #{tpu_custom_call.1} parent=1 // pred_fallthru
      _
    // Predicated region
    $region18: #{tpu_custom_call.1} parent=1 // pred_check
      _
    $region19: #{tpu_custom_call.1} parent=1 // pred_check_branch
      %51 = sbr.rel (0) target = $region21
    $region20: #{tpu_custom_call.1} parent=1 // pred_region
      %52 = dma.done [#allocation6], 1024
    $region21: #{tpu_custom_call.1} parent=1 // pred_fallthru
      _
    // Predicated region
    $region22: #{tpu_custom_call.1} parent=1 // pred_check
      _
    $region23: #{tpu_custom_call.1} parent=1 // pred_check_branch
      %54 = sbr.rel (0) target = $region25
    $region24: #{tpu_custom_call.1} parent=1 // pred_region
      %55 = dma.done [#allocation6], 2048
    $region25: #{tpu_custom_call.1} parent=1 // pred_fallthru
      _
    %v57 = vld [vmem:[#allocation2] sm:$0xf]
    %v58 = vld [vmem:[#allocation2 + $0x4] sm:$0xf]
    %v59 = vld [vmem:[#allocation2 + $0x8] sm:$0xf]
    %v60 = vld [vmem:[#allocation2 + $0xc] sm:$0xf]
    %v61 = vld [vmem:[#allocation2 + $0x10] sm:$0xf]
    %v62 = vld [vmem:[#allocation2 + $0x14] sm:$0xf]
    %v63 = vld [vmem:[#allocation2 + $0x18] sm:$0xf]
    %v64 = vld [vmem:[#allocation2 + $0x1c] sm:$0xf]
    %v65 = vld [vmem:[#allocation2 + $0x20] sm:$0xf]
    %v66 = vld [vmem:[#allocation2 + $0x24] sm:$0xf]
    %v67 = vld [vmem:[#allocation2 + $0x28] sm:$0xf]
    %v68 = vld [vmem:[#allocation2 + $0x2c] sm:$0xf]
    %v69 = vld [vmem:[#allocation2 + $0x30] sm:$0xf]
    %v70 = vld [vmem:[#allocation2 + $0x34] sm:$0xf]
    %v71 = vld [vmem:[#allocation2 + $0x38] sm:$0xf]
    %v72 = vld [vmem:[#allocation2 + $0x3c] sm:$0xf]
    %v73 = vld [vmem:[#allocation5] sm:$0xf]
    %v74 = vld [vmem:[#allocation5 + $0x4] sm:$0xf]
    %v75 = vld [vmem:[#allocation5 + $0x8] sm:$0xf]
    %v76 = vld [vmem:[#allocation5 + $0xc] sm:$0xf]
    %v77 = vld [vmem:[#allocation5 + $0x10] sm:$0xf]
    %v78 = vld [vmem:[#allocation5 + $0x14] sm:$0xf]
    %v79 = vld [vmem:[#allocation5 + $0x18] sm:$0xf]
    %v80 = vld [vmem:[#allocation5 + $0x1c] sm:$0xf]
    %v81 = vld [vmem:[#allocation5 + $0x20] sm:$0xf]
    %v82 = vld [vmem:[#allocation5 + $0x24] sm:$0xf]
    %v83 = vld [vmem:[#allocation5 + $0x28] sm:$0xf]
    %v84 = vld [vmem:[#allocation5 + $0x2c] sm:$0xf]
    %v85 = vld [vmem:[#allocation5 + $0x30] sm:$0xf]
    %v86 = vld [vmem:[#allocation5 + $0x34] sm:$0xf]
    %v87 = vld [vmem:[#allocation5 + $0x38] sm:$0xf]
    %v88 = vld [vmem:[#allocation5 + $0x3c] sm:$0xf]
    %v105 = vunpack.c.l.b16 %v57
    %v106 = vunpack.c.l.b16 %v58
    %v107 = vunpack.c.l.b16 %v59
    %v108 = vunpack.c.l.b16 %v60
    %v109 = vunpack.c.l.b16 %v61
    %v110 = vunpack.c.l.b16 %v62
    %v111 = vunpack.c.l.b16 %v63
    %v112 = vunpack.c.l.b16 %v64
    %v113 = vunpack.c.l.b16 %v65
    %v114 = vunpack.c.l.b16 %v66
    %v115 = vunpack.c.l.b16 %v67
    %v116 = vunpack.c.l.b16 %v68
    %v117 = vunpack.c.l.b16 %v69
    %v118 = vunpack.c.l.b16 %v70
    %v119 = vunpack.c.l.b16 %v71
    %v120 = vunpack.c.l.b16 %v72
    %v121 = vpack.c.b16 %v106, %v105
    %v122 = vpack.c.b16 %v108, %v107
    %v123 = vpack.c.b16 %v110, %v109
    %v124 = vpack.c.b16 %v112, %v111
    %v125 = vpack.c.b16 %v114, %v113
    %v126 = vpack.c.b16 %v116, %v115
    %v127 = vpack.c.b16 %v118, %v117
    %v128 = vpack.c.b16 %v120, %v119
    %v153 = vunpack.c.l.b16 %v73
    %v154 = vunpack.c.l.b16 %v74
    %v155 = vunpack.c.l.b16 %v75
    %v156 = vunpack.c.l.b16 %v76
    %v157 = vunpack.c.l.b16 %v77
    %v158 = vunpack.c.l.b16 %v78
    %v159 = vunpack.c.l.b16 %v79
    %v160 = vunpack.c.l.b16 %v80
    %v161 = vunpack.c.l.b16 %v81
    %v162 = vunpack.c.l.b16 %v82
    %v163 = vunpack.c.l.b16 %v83
    %v164 = vunpack.c.l.b16 %v84
    %v165 = vunpack.c.l.b16 %v85
    %v166 = vunpack.c.l.b16 %v86
    %v167 = vunpack.c.l.b16 %v87
    %v168 = vunpack.c.l.b16 %v88
    %v169 = vpack.c.b16 %v154, %v153
    %v170 = vpack.c.b16 %v156, %v155
    %v171 = vpack.c.b16 %v158, %v157
    %v172 = vpack.c.b16 %v160, %v159
    %v173 = vpack.c.b16 %v162, %v161
    %v174 = vpack.c.b16 %v164, %v163
    %v175 = vpack.c.b16 %v166, %v165
    %v176 = vpack.c.b16 %v168, %v167
    %185 = vmatprep.subr.bf16.mxu0 0
    %186 = vmatpush1.bf16.msra.mxu0 %v169
    %187 = vmatprep.subr.bf16.mxu0 0
    %188 = vmatpush1.bf16.msra.mxu0 %v170
    %189 = vmatprep.subr.bf16.mxu0 0
    %190 = vmatpush1.bf16.msra.mxu0 %v171
    %191 = vmatprep.subr.bf16.mxu0 0
    %192 = vmatpush1.bf16.msra.mxu0 %v172
    %193 = vmatprep.subr.bf16.mxu0 0
    %194 = vmatpush1.bf16.msra.mxu0 %v173
    %195 = vmatprep.subr.bf16.mxu0 0
    %196 = vmatpush1.bf16.msra.mxu0 %v174
    %197 = vmatprep.subr.bf16.mxu0 0
    %198 = vmatpush1.bf16.msra.mxu0 %v175
    %199 = vmatprep.subr.bf16.mxu0 0
    %200 = vmatpush1.bf16.msra.mxu0 %v176
    %201 = vmatprep.subr.bf16.mxu0 0
    %202 = vmatpush1.bf16.msra.mxu0 0
    %203 = vmatprep.subr.bf16.mxu0 0
    %204 = vmatpush1.bf16.msra.mxu0 0
    %205 = vmatprep.subr.bf16.mxu0 0
    %206 = vmatpush1.bf16.msra.mxu0 0
    %207 = vmatprep.subr.bf16.mxu0 0
    %208 = vmatpush1.bf16.msra.mxu0 0
    %209 = vmatprep.subr.bf16.mxu0 0
    %210 = vmatpush1.bf16.msra.mxu0 0
    %211 = vmatprep.subr.bf16.mxu0 0
    %212 = vmatpush1.bf16.msra.mxu0 0
    %213 = vmatprep.subr.bf16.mxu0 0
    %214 = vmatpush1.bf16.msra.mxu0 0
    %215 = vmatprep.subr.bf16.mxu0 0
    %216 = vmatpush1.bf16.msra.mxu0 0
    %217 = vmatprep.mubr.bf16.mxu0 0
    %218 = vmatmul.mubr.bf16.gmra.mrb[0].mxu0 %v121
    %v219 = vpop.f32.mrb[0].mxu0
    %v220 = vadd.f32 0.0, %v219
    %v221 = vpop.f32.mrb[0].mxu0
    %v222 = vpop.f32.mrb[0].mxu0
    %v223 = vadd.f32 0.0, %v222
    %v224 = vpop.f32.mrb[0].mxu0
    %225 = vmatprep.mubr.bf16.mxu0 0
    %226 = vmatmul.mubr.bf16.gmra.mrb[0].mxu0 %v122
    %v227 = vpop.f32.mrb[0].mxu0
    %v228 = vadd.f32 0.0, %v227
    %v229 = vpop.f32.mrb[0].mxu0
    %v230 = vpop.f32.mrb[0].mxu0
    %v231 = vadd.f32 0.0, %v230
    %v232 = vpop.f32.mrb[0].mxu0
    %233 = vmatprep.mubr.bf16.mxu0 0
    %234 = vmatmul.mubr.bf16.gmra.mrb[0].mxu0 %v123
    %v235 = vpop.f32.mrb[0].mxu0
    %v236 = vadd.f32 0.0, %v235
    %v237 = vpop.f32.mrb[0].mxu0
    %v238 = vpop.f32.mrb[0].mxu0
    %v239 = vadd.f32 0.0, %v238
    %v240 = vpop.f32.mrb[0].mxu0
    %241 = vmatprep.mubr.bf16.mxu0 0
    %242 = vmatmul.mubr.bf16.gmra.mrb[0].mxu0 %v124
    %v243 = vpop.f32.mrb[0].mxu0
    %v244 = vadd.f32 0.0, %v243
    %v245 = vpop.f32.mrb[0].mxu0
    %v246 = vpop.f32.mrb[0].mxu0
    %v247 = vadd.f32 0.0, %v246
    %v248 = vpop.f32.mrb[0].mxu0
    %249 = vmatprep.mubr.bf16.mxu0 0
    %250 = vmatmul.mubr.bf16.gmra.mrb[0].mxu0 %v125
    %v251 = vpop.f32.mrb[0].mxu0
    %v252 = vadd.f32 0.0, %v251
    %v253 = vpop.f32.mrb[0].mxu0
    %v254 = vpop.f32.mrb[0].mxu0
    %v255 = vadd.f32 0.0, %v254
    %v256 = vpop.f32.mrb[0].mxu0
    %257 = vmatprep.mubr.bf16.mxu0 0
    %258 = vmatmul.mubr.bf16.gmra.mrb[0].mxu0 %v126
    %v259 = vpop.f32.mrb[0].mxu0
    %v260 = vadd.f32 0.0, %v259
    %v261 = vpop.f32.mrb[0].mxu0
    %v262 = vpop.f32.mrb[0].mxu0
    %v263 = vadd.f32 0.0, %v262
    %v264 = vpop.f32.mrb[0].mxu0
    %265 = vmatprep.mubr.bf16.mxu0 0
    %266 = vmatmul.mubr.bf16.gmra.mrb[0].mxu0 %v127
    %v267 = vpop.f32.mrb[0].mxu0
    %v268 = vadd.f32 0.0, %v267
    %v269 = vpop.f32.mrb[0].mxu0
    %v270 = vpop.f32.mrb[0].mxu0
    %v271 = vadd.f32 0.0, %v270
    %v272 = vpop.f32.mrb[0].mxu0
    %273 = vmatprep.mubr.bf16.mxu0 0
    %274 = vmatmul.mubr.bf16.gmra.mrb[0].mxu0 %v128
    %v275 = vpop.f32.mrb[0].mxu0
    %v276 = vadd.f32 0.0, %v275
    %v277 = vpop.f32.mrb[0].mxu0
    %v278 = vpop.f32.mrb[0].mxu0
    %v279 = vadd.f32 0.0, %v278
    %v280 = vpop.f32.mrb[0].mxu0
    %281 = vdwg.mxu0
    %v282 = vld [vmem:[#allocation7] sm:$0xff]
    %v283 = vld [vmem:[#allocation7 + $0x8] sm:$0xff]
    %v284 = vld [vmem:[#allocation7 + $0x10] sm:$0xff]
    %v285 = vld [vmem:[#allocation7 + $0x18] sm:$0xff]
    %v286 = vld [vmem:[#allocation7 + $0x20] sm:$0xff]
    %v287 = vld [vmem:[#allocation7 + $0x28] sm:$0xff]
    %v288 = vld [vmem:[#allocation7 + $0x30] sm:$0xff]
    %v289 = vld [vmem:[#allocation7 + $0x38] sm:$0xff]
    %v290 = vld [vmem:[#allocation7 + $0x40] sm:$0xff]
    %v291 = vld [vmem:[#allocation7 + $0x48] sm:$0xff]
    %v292 = vld [vmem:[#allocation7 + $0x50] sm:$0xff]
    %v293 = vld [vmem:[#allocation7 + $0x58] sm:$0xff]
    %v294 = vld [vmem:[#allocation7 + $0x60] sm:$0xff]
    %v295 = vld [vmem:[#allocation7 + $0x68] sm:$0xff]
    %v296 = vld [vmem:[#allocation7 + $0x70] sm:$0xff]
    %v297 = vld [vmem:[#allocation7 + $0x78] sm:$0xff]
    %299 = vset.pattern.permute.xlu0 0
    %300 = vperm.xlu0 %299, %v282
    %v301 = vpop.permute.xlu0 %300
    %304 = vset.pattern.permute.xlu0 0
    %305 = vperm.xlu0 %304, %v283
    %v306 = vpop.permute.xlu0 %305
    %309 = vset.pattern.permute.xlu0 0
    %310 = vperm.xlu0 %309, %v284
    %v311 = vpop.permute.xlu0 %310
    %314 = vset.pattern.permute.xlu0 0
    %315 = vperm.xlu0 %314, %v285
    %v316 = vpop.permute.xlu0 %315
    %319 = vset.pattern.permute.xlu0 0
    %320 = vperm.xlu0 %319, %v286
    %v321 = vpop.permute.xlu0 %320
    %324 = vset.pattern.permute.xlu0 0
    %325 = vperm.xlu0 %324, %v287
    %v326 = vpop.permute.xlu0 %325
    %329 = vset.pattern.permute.xlu0 0
    %330 = vperm.xlu0 %329, %v288
    %v331 = vpop.permute.xlu0 %330
    %334 = vset.pattern.permute.xlu0 0
    %335 = vperm.xlu0 %334, %v289
    %v336 = vpop.permute.xlu0 %335
    %339 = vset.pattern.permute.xlu0 0
    %340 = vperm.xlu0 %339, %v290
    %v341 = vpop.permute.xlu0 %340
    %344 = vset.pattern.permute.xlu0 0
    %345 = vperm.xlu0 %344, %v291
    %v346 = vpop.permute.xlu0 %345
    %349 = vset.pattern.permute.xlu0 0
    %350 = vperm.xlu0 %349, %v292
    %v351 = vpop.permute.xlu0 %350
    %354 = vset.pattern.permute.xlu0 0
    %355 = vperm.xlu0 %354, %v293
    %v356 = vpop.permute.xlu0 %355
    %359 = vset.pattern.permute.xlu0 0
    %360 = vperm.xlu0 %359, %v294
    %v361 = vpop.permute.xlu0 %360
    %364 = vset.pattern.permute.xlu0 0
    %365 = vperm.xlu0 %364, %v295
    %v366 = vpop.permute.xlu0 %365
    %369 = vset.pattern.permute.xlu0 0
    %370 = vperm.xlu0 %369, %v296
    %v371 = vpop.permute.xlu0 %370
    %374 = vset.pattern.permute.xlu0 0
    %375 = vperm.xlu0 %374, %v297
    %v376 = vpop.permute.xlu0 %375
    %v378 = vmul.f32 %v220, %v301
    %v379 = vmul.f32 %v223, %v306
    %v380 = vmul.f32 %v228, %v311
    %v381 = vmul.f32 %v231, %v316
    %v382 = vmul.f32 %v236, %v321
    %v383 = vmul.f32 %v239, %v326
    %v384 = vmul.f32 %v244, %v331
    %v385 = vmul.f32 %v247, %v336
    %v386 = vmul.f32 %v252, %v341
    %v387 = vmul.f32 %v255, %v346
    %v388 = vmul.f32 %v260, %v351
    %v389 = vmul.f32 %v263, %v356
    %v390 = vmul.f32 %v268, %v361
    %v391 = vmul.f32 %v271, %v366
    %v392 = vmul.f32 %v276, %v371
    %v393 = vmul.f32 %v279, %v376
    %v394 = vpack.c.bf16 %v379, %v378
    %v395 = vpack.c.bf16 %v381, %v380
    %v396 = vpack.c.bf16 %v383, %v382
    %v397 = vpack.c.bf16 %v385, %v384
    %v398 = vpack.c.bf16 %v387, %v386
    %v399 = vpack.c.bf16 %v389, %v388
    %v400 = vpack.c.bf16 %v391, %v390
    %v401 = vpack.c.bf16 %v393, %v392
    %v410 = vunpack.c.l.b16 %v394
    %v411 = vunpack.c.h.b16 %v394
    %v412 = vunpack.c.l.b16 %v395
    %v413 = vunpack.c.h.b16 %v395
    %v414 = vunpack.c.l.b16 %v396
    %v415 = vunpack.c.h.b16 %v396
    %v416 = vunpack.c.l.b16 %v397
    %v417 = vunpack.c.h.b16 %v397
    %v418 = vunpack.c.l.b16 %v398
    %v419 = vunpack.c.h.b16 %v398
    %v420 = vunpack.c.l.b16 %v399
    %v421 = vunpack.c.h.b16 %v399
    %v422 = vunpack.c.l.b16 %v400
    %v423 = vunpack.c.h.b16 %v400
    %v424 = vunpack.c.l.b16 %v401
    %v425 = vunpack.c.h.b16 %v401
    %v426 = vpack.c.b16 %v410, %v410
    %v427 = vpack.c.b16 %v411, %v411
    %v428 = vpack.c.b16 %v412, %v412
    %v429 = vpack.c.b16 %v413, %v413
    %v430 = vpack.c.b16 %v414, %v414
    %v431 = vpack.c.b16 %v415, %v415
    %v432 = vpack.c.b16 %v416, %v416
    %v433 = vpack.c.b16 %v417, %v417
    %v434 = vpack.c.b16 %v418, %v418
    %v435 = vpack.c.b16 %v419, %v419
    %v436 = vpack.c.b16 %v420, %v420
    %v437 = vpack.c.b16 %v421, %v421
    %v438 = vpack.c.b16 %v422, %v422
    %v439 = vpack.c.b16 %v423, %v423
    %v440 = vpack.c.b16 %v424, %v424
    %v441 = vpack.c.b16 %v425, %v425
    %458 = vst [vmem:[#allocation8] sm:$0xf] %v426
    %459 = vst [vmem:[#allocation8 + $0x4] sm:$0xf] %v427
    %460 = vst [vmem:[#allocation8 + $0x8] sm:$0xf] %v428
    %461 = vst [vmem:[#allocation8 + $0xc] sm:$0xf] %v429
    %462 = vst [vmem:[#allocation8 + $0x10] sm:$0xf] %v430
    %463 = vst [vmem:[#allocation8 + $0x14] sm:$0xf] %v431
    %464 = vst [vmem:[#allocation8 + $0x18] sm:$0xf] %v432
    %465 = vst [vmem:[#allocation8 + $0x1c] sm:$0xf] %v433
    %466 = vst [vmem:[#allocation8 + $0x20] sm:$0xf] %v434
    %467 = vst [vmem:[#allocation8 + $0x24] sm:$0xf] %v435
    %468 = vst [vmem:[#allocation8 + $0x28] sm:$0xf] %v436
    %469 = vst [vmem:[#allocation8 + $0x2c] sm:$0xf] %v437
    %470 = vst [vmem:[#allocation8 + $0x30] sm:$0xf] %v438
    %471 = vst [vmem:[#allocation8 + $0x34] sm:$0xf] %v439
    %472 = vst [vmem:[#allocation8 + $0x38] sm:$0xf] %v440
    %473 = vst [vmem:[#allocation8 + $0x3c] sm:$0xf] %v441
    // Predicated region
    $region26: #{tpu_custom_call.1} parent=1 // pred_check
      _
    $region27: #{tpu_custom_call.1} parent=1 // pred_check_branch
      %475 = sbr.rel (0) target = $region29
    $region28: #{tpu_custom_call.1} parent=1 // pred_region
      %s477 = ssub.s32 1024, 1024
      %478 = vsyncadd [#allocation4], %s477
      %s479 = sshll.u32 [#allocation8], 4
      %s480 = int_to_ptr.vmem [resolvable:$true] %s479
      %485 = dma.vmem_to_hbm [thread:$0]  %s480, 1024, %s3, [#allocation4], 64, 64, 4
    $region29: #{tpu_custom_call.1} parent=1 // pred_fallthru
      _
    // Predicated region
    $region30: #{tpu_custom_call.1} parent=1 // pred_check
      _
    $region31: #{tpu_custom_call.1} parent=1 // pred_check_branch
      %487 = sbr.rel (0) target = $region33
    $region32: #{tpu_custom_call.1} parent=1 // pred_region
      %488 = dma.done [#allocation4], 1024
    $region33: #{tpu_custom_call.1} parent=1 // pred_fallthru
      _
    %489 = vsyncpa [#allocation3], 1
    %490 = vsyncpa [#allocation6], 1
    %491 = vsyncpa [#allocation4], 1

</llo_original>
